<compile_context>
chip_gen: v7x
topology: tpu7x:2x2x1
jax: 0.10.0
libtpu: 0.0.40
codegen_flags: <defaults>
</compile_context>

<pallas_src>
import math
import numpy as np
import jax
import jax.numpy as jnp
from jax.experimental import pallas as pl
from jax.experimental.pallas import tpu as pltpu


# ------------------------------------------------------------------
# Parameter construction (glue, plain numpy)
# ------------------------------------------------------------------
def create_lpf_rect_1d(N, cutoff=0.5):
    """Matches the per-axis mask built inside create_lpf_rect (PyTorch spec)."""
    cutoff_low = int(N * cutoff // 2)
    cutoff_high = int(N - cutoff_low)
    rect = np.ones(N, dtype=np.float64)
    rect[cutoff_low + 1:cutoff_high] = 0.0
    if N % 4 == 0:
        rect[cutoff_low] = 0.0
        rect[cutoff_high] = 0.0
    return rect


def lpf_filter_matrix(N, cutoff=0.5):
    """B = Re( IDFT_N @ diag(rect) @ DFT_N ) -- real because rect is symmetric."""
    rect = create_lpf_rect_1d(N, cutoff)
    n = np.arange(N)
    F = np.exp(-2j * math.pi * np.outer(n, n) / N)          # DFT
    Finv = np.conj(F) / N                                   # IDFT
    B = (Finv * rect[None, :]) @ F                          # IDFT diag(r) DFT
    return np.real(B).astype(np.float32)


# ------------------------------------------------------------------
# Pallas kernel: per grid step, TB lane-folded images
#   X   : (H, TB*W)            (bf16)   -- X[:, j*W:(j+1)*W] = x[j]
#   out = B1 @ X @ kron(I_TB, B2^T)     -- two plain lane-dense 2-D GEMMs
# ------------------------------------------------------------------
def _lpf_kernel(x_ref, b1_ref, bd_ref, o_ref):
    xl = x_ref[0]                                            # (H, TB*W) bf16
    y = jnp.dot(b1_ref[...], xl,
                preferred_element_type=jnp.float32)          # (H, TB*W) f32
    o = jnp.dot(y.astype(jnp.bfloat16), bd_ref[...],
                preferred_element_type=jnp.float32)          # (H, TB*W) f32
    o_ref[0] = o.astype(o_ref.dtype)


def _choose_tile_batch(n_imgs, H, W):
    """Pick how many images to fold per grid step, and estimate VMEM use."""
    tb = max(1, 512 // max(W, 1))          # target ~512 lanes (85%+ of roofline)

    def vmem_bytes(t):
        blk = H * t * W
        return (2 * 2 * blk * 2            # double-buffered in + out (bf16)
                + 2 * (t * W) ** 2 * 2     # double-buffered block-diag RHS (bf16)
                + 2 * H * H * 2            # double-buffered B1 (bf16)
                + 2 * blk * 4)             # f32 accumulators / temporaries

    budget = 24 * 1024 * 1024              # leaves headroom on v7x's 64 MiB VMEM
    while tb > 1 and vmem_bytes(tb) > budget:
        tb -= 1
    tb = min(tb, n_imgs)
    # keep >= 2 grid steps when possible so both v7x TensorCores get work
    if n_imgs > 1 and tb >= n_imgs:
        tb = (n_imgs + 1) // 2
    tb = max(tb, 1)
    return tb, vmem_bytes(tb)


# ------------------------------------------------------------------
# Wrapper
# ------------------------------------------------------------------
def lpf_rfft(x, cutoff=0.5):
    """x: NCHW float array. Returns ideal-LPF'd x (same shape/dtype)."""
    B, C, H, W = x.shape
    n_imgs = B * C
    tb, vmem_est = _choose_tile_batch(n_imgs, H, W)
    grid = pl.cdiv(n_imgs, tb)
    n_pad = grid * tb
    lanes = tb * W

    # Filter matrices (bf16 into the kernel; f32 accumulation inside).
    b1 = jnp.asarray(lpf_filter_matrix(H, cutoff), dtype=jnp.bfloat16)   # (H, H)
    b2t = lpf_filter_matrix(W, cutoff).T                                 # (W, W)
    bd = jnp.asarray(np.kron(np.eye(tb, dtype=np.float32), b2t),
                     dtype=jnp.bfloat16)                                 # (TB*W, TB*W)

    # Lane-fold the images in the wrapper (cheap XLA reshape/transpose):
    #   (n_pad, H, W) -> (grid, H, TB*W)
    x_flat = x.reshape(n_imgs, H, W)
    if n_pad != n_imgs:
        x_flat = jnp.pad(x_flat, ((0, n_pad - n_imgs), (0, 0), (0, 0)))
    x_l = (x_flat.astype(jnp.bfloat16)
           .reshape(grid, tb, H, W)
           .transpose(0, 2, 1, 3)
           .reshape(grid, H, lanes))

    compiler_kwargs = dict(dimension_semantics=("parallel",))
    if vmem_est > 12 * 1024 * 1024:
        # raise the scoped VMEM limit (defaults: 16 MiB v5e / 32 MiB v6e,v7x)
        compiler_kwargs["vmem_limit_bytes"] = 48 * 1024 * 1024

    out_l = pl.pallas_call(
        _lpf_kernel,
        out_shape=jax.ShapeDtypeStruct((grid, H, lanes), jnp.bfloat16),
        grid_spec=pltpu.PrefetchScalarGridSpec(
            num_scalar_prefetch=0,
            grid=(grid,),
            in_specs=[
                pl.BlockSpec((1, H, lanes), lambda i: (i, 0, 0)),   # TB images/step
                pl.BlockSpec((H, H), lambda i: (0, 0)),             # B1 resident
                pl.BlockSpec((lanes, lanes), lambda i: (0, 0)),     # kron(I, B2^T)
            ],
            out_specs=pl.BlockSpec((1, H, lanes), lambda i: (i, 0, 0)),
        ),
        compiler_params=pltpu.CompilerParams(**compiler_kwargs),
    )(x_l, b1, bd)

    # Undo the lane fold: (grid, H, TB*W) -> (B, C, H, W)
    out = (out_l.reshape(grid, H, tb, W)
           .transpose(0, 2, 1, 3)
           .reshape(n_pad, H, W)[:n_imgs]
           .reshape(B, C, H, W)
           .astype(x.dtype))
    return out


# ------------------------------------------------------------------
# Reference (pure JAX, mirrors the PyTorch forward) for self-check
# ------------------------------------------------------------------
def lpf_rfft_reference(x, cutoff=0.5):
    N1, N2 = x.shape[-2], x.shape[-1]
    r1 = jnp.asarray(create_lpf_rect_1d(N1, cutoff), dtype=jnp.float32)
    r2 = jnp.asarray(create_lpf_rect_1d(N2, cutoff), dtype=jnp.float32)
    rect = (r1[:, None] * r2[None, :])[:, : N2 // 2 + 1]
    x_fft = jnp.fft.rfft2(x)
    x_fft = x_fft * rect
    return jnp.fft.irfft2(x_fft)


if __name__ == "__main__":
    key = jax.random.PRNGKey(0)
    x = jax.random.normal(key, (2, 4, 16, 16), dtype=jnp.float32)  # NCHW

    out = lpf_rfft(x, cutoff=0.5)
    out = jax.block_until_ready(out)

    ref = lpf_rfft_reference(x, cutoff=0.5)
    assert out.shape == x.shape
    # bf16 MXU path: tolerance relaxed vs the pure-f32 version.
    np.testing.assert_allclose(np.asarray(out), np.asarray(ref),
                               rtol=5e-2, atol=5e-2)
    print("KERNEL_OK")
</pallas_src>

<mosaic_0001>
module attributes {stable_mosaic.version = 11 : i64} {
  func.func @_lpf_kernel(%arg0: i32, %arg1: memref<1x16x64xbf16, #tpu.memory_space<vmem>>, %arg2: memref<16x16xbf16, #tpu.memory_space<vmem>>, %arg3: memref<64x64xbf16, #tpu.memory_space<vmem>>, %arg4: memref<1x16x64xbf16, #tpu.memory_space<vmem>>) attributes {dimension_semantics = [#tpu.dimension_semantics<parallel>], iteration_bounds = array<i64: 2>, scalar_prefetch = 0 : i64, scratch_operands = 0 : i64, tpu.core_type = #tpu.core_type<tc>, window_params = [{transform_indices = @transform_0, window_bounds = array<i64: 1, 16, 64>}, {pipeline_mode = #tpu.pipeline_mode<synchronous>, transform_indices = @transform_1, window_bounds = array<i64: 16, 16>}, {pipeline_mode = #tpu.pipeline_mode<synchronous>, transform_indices = @transform_2, window_bounds = array<i64: 64, 64>}, {transform_indices = @transform_3, window_bounds = array<i64: 1, 16, 64>}]} {
    %c0 = arith.constant 0 : index
    %c0_0 = arith.constant 0 : index
    %c0_1 = arith.constant 0 : index
    %0 = vector.load %arg1[%c0, %c0_0, %c0_1] : memref<1x16x64xbf16, #tpu.memory_space<vmem>>, vector<1x16x64xbf16>
    %1 = vector.shape_cast %0 : vector<1x16x64xbf16> to vector<16x64xbf16>
    %c0_2 = arith.constant 0 : index
    %c0_3 = arith.constant 0 : index
    %2 = vector.load %arg2[%c0_2, %c0_3] : memref<16x16xbf16, #tpu.memory_space<vmem>>, vector<16x16xbf16>
    %cst = arith.constant dense<0.000000e+00> : vector<16x64xf32>
    %3 = tpu.matmul %2, %1, %cst {dimension_numbers = #tpu.dot_dimension_numbers<[1], [0], [0], [1], [0, 0, 1, 1], [], []>} : vector<16x16xbf16>, vector<16x64xbf16>, vector<16x64xf32> -> vector<16x64xf32>
    %4 = arith.truncf %3 : vector<16x64xf32> to vector<16x64xbf16>
    %c0_4 = arith.constant 0 : index
    %c0_5 = arith.constant 0 : index
    %5 = vector.load %arg3[%c0_4, %c0_5] : memref<64x64xbf16, #tpu.memory_space<vmem>>, vector<64x64xbf16>
    %cst_6 = arith.constant dense<0.000000e+00> : vector<16x64xf32>
    %6 = tpu.matmul %4, %5, %cst_6 {dimension_numbers = #tpu.dot_dimension_numbers<[1], [0], [0], [1], [0, 0, 1, 1], [], []>} : vector<16x64xbf16>, vector<64x64xbf16>, vector<16x64xf32> -> vector<16x64xf32>
    %7 = arith.truncf %6 : vector<16x64xf32> to vector<16x64xbf16>
    %c0_7 = arith.constant 0 : index
    %c0_8 = arith.constant 0 : index
    %c0_9 = arith.constant 0 : index
    %8 = vector.load %arg4[%c0_7, %c0_8, %c0_9] : memref<1x16x64xbf16, #tpu.memory_space<vmem>>, vector<1x16x64xbf16>
    %9 = vector.shape_cast %8 : vector<1x16x64xbf16> to vector<16x64xbf16>
    %10 = vector.shape_cast %7 : vector<16x64xbf16> to vector<1x16x64xbf16>
    tpu.vector_store %arg4[%c0_7, %c0_8, %c0_9], %10 {strides = array<i32>} : memref<1x16x64xbf16, #tpu.memory_space<vmem>>, vector<1x16x64xbf16>,
    return
  }
  func.func @transform_0(%arg0: i32) -> (i32, i32, i32) {
    %c0_i32 = arith.constant 0 : i32
    %c0_i32_0 = arith.constant 0 : i32
    %c0_i32_1 = arith.constant 0 : i32
    return %arg0, %c0_i32, %c0_i32_0 : i32, i32, i32
  }
  func.func @transform_1(%arg0: i32) -> (i32, i32) {
    %c0_i32 = arith.constant 0 : i32
    %c0_i32_0 = arith.constant 0 : i32
    %c0_i32_1 = arith.constant 0 : i32
    return %c0_i32, %c0_i32_0 : i32, i32
  }
  func.func @transform_2(%arg0: i32) -> (i32, i32) {
    %c0_i32 = arith.constant 0 : i32
    %c0_i32_0 = arith.constant 0 : i32
    %c0_i32_1 = arith.constant 0 : i32
    return %c0_i32, %c0_i32_0 : i32, i32
  }
  func.func @transform_3(%arg0: i32) -> (i32, i32, i32) {
    %c0_i32 = arith.constant 0 : i32
    %c0_i32_0 = arith.constant 0 : i32
    %c0_i32_1 = arith.constant 0 : i32
    return %arg0, %c0_i32, %c0_i32_0 : i32, i32, i32
  }
}

</mosaic_0001>

<llo_original>
// kernel: tpu_custom_call.1
$region0: #{tpu_custom_call.1}
  #allocation0 [shape = 'u32[]', space=smem, size = 0x4, offset = 0x4, fixed_abs, tag = 'smem constant byte address 0x4 - core index']
  #allocation1 [shape = 'u32[144,128]{1,0:T(1,128)}', space=vmem, size = 0x12000, scoped, tag = 'internal scratch']
  %s0 = inlined_call_operand.hbm [shape: bf16[2,16,64], index: 0, kind: input, shape index: {}]
  %s1 = inlined_call_operand.hbm [shape: bf16[16,16], index: 1, kind: input, shape index: {}]
  %s2 = inlined_call_operand.hbm [shape: bf16[64,64], index: 2, kind: input, shape index: {}]
  %s3 = inlined_call_operand.hbm [shape: bf16[2,16,64], index: 3, kind: output, shape index: {}]
  %s4 = sld [smem:[#allocation0]]
  $region57: #{tpu_custom_call.1} parent=0
    _
  %s6 = ssub.s32 1, %s4
  %s7 = scalar_select 0, %s6, %s4
  $region1: #{tpu_custom_call.1} parent=0
    #allocation2 [shape = 'u8[8192]{0}', space=vmem, size = 0x2000, scoped, tag = 'input window, operand 0']
    #allocation3 [shape = 's32[2]{0}', space=sflag, size = 0x8, scoped, tag = 'scoped memory for tpu_custom_call.1']
    #allocation4 [shape = 's32[2]{0}', space=sflag, size = 0x8, scoped, tag = 'scoped memory for tpu_custom_call.1']
    #allocation5 [shape = 'u8[4096]{0}', space=vmem, size = 0x1000, scoped, tag = 'input window, operand 1, single buffered']
    #allocation6 [shape = 's32[1]{0}', space=sflag, size = 0x4, scoped, tag = 'scoped memory for tpu_custom_call.1']
    #allocation7 [shape = 'u8[16384]{0}', space=vmem, size = 0x4000, scoped, tag = 'input window, operand 2, single buffered']
    #allocation8 [shape = 'u8[8192]{0}', space=vmem, size = 0x2000, scoped, tag = 'output window, operand 0']
    %8 = vsyncpa [#allocation3], 0
    %s9 = scalar_lea.sflag [#allocation3], 1
    %10 = vsyncpa %s9, 0
    %11 = vsyncpa [#allocation6], 0
    %12 = vsyncpa [#allocation4], 0
    %s13 = scalar_lea.sflag [#allocation4], 1
    %14 = vsyncpa %s13, 0
    loop: start=0, step=1, limit=4
    $region2: #{tpu_custom_call.1} parent=1 // loop_pre_header
      _
    $region3: #{tpu_custom_call.1} parent=1 // loop_header
      %s16 = sphi 0, %s20
      %p17 = scmp.ge.s32.totalorder %s16, 4
      %s26 = sphi 0, %s28
      %s29 = sphi 0, %s26
      %s30 = sphi 0, %s29
      %s46 = sphi 0, %s30
      %s50 = sphi 0, %s50
      %s52 = sphi 0, %s50
      %s53 = sphi 0, %s52
      %s67 = sphi 0, %s53
      %s71 = sphi 0, %s71
      %s73 = sphi 0, %s71
      %s74 = sphi 0, %s73
      %s88 = sphi 0, %s74
      %s94 = sphi 0, %s96
      %s97 = sphi 0, %s94
      %s98 = sphi 0, %s97
      %s114 = sphi 0, %s98
    $region4: #{tpu_custom_call.1} parent=1 // loop_header_branch
      %19 = sbr.rel (%p17) target = $region8
    $region5: #{tpu_custom_call.1} parent=1 // loop_body
      %s21 = ssub.s32 %s16, 1
      %s22 = ssub.s32 %s16, 2
      %s23 = sadd.s32 %s16, 1
      %s24 = ssub.s32 %s16, %s23
      %p25 = scmp.eq.s32.totalorder %s24, 0
      %s27 = sadd.s32 %s26, 1
      %s28 = scalar_select %p25, %s26, %s27
      %p31 = pneg %p25
      %p32 = scmp.eq.s32.totalorder %s16, 1
      %p33 = por %p31, %p32
      %p34 = scmp.ne.s32.totalorder %s26, %s29
      %p35 = scmp.eq.s32.totalorder %s16, 0
      %p36 = por %p34, %p35
      %p37 = scmp.ne.s32.totalorder %s26, %s29
      %p38 = scmp.eq.s32.totalorder %s21, 1
      %p39 = por %p37, %p38
      %p40 = scmp.ne.s32.totalorder %s29, %s30
      %p41 = scmp.eq.s32.totalorder %s21, 0
      %p42 = por %p40, %p41
      %p43 = scmp.ne.s32.totalorder %s29, %s30
      %p44 = scmp.eq.s32.totalorder %s22, 1
      %p45 = por %p43, %p44
      %p47 = scmp.ne.s32.totalorder %s30, %s46
      %p48 = scmp.eq.s32.totalorder %s22, 0
      %p49 = por %p47, %p48
      %s51 = sadd.s32 %s50, 1
      %p54 = scmp.eq.s32.totalorder %s16, 1
      %p55 = scmp.ne.s32.totalorder %s50, %s52
      %p56 = scmp.eq.s32.totalorder %s16, 0
      %p57 = por %p55, %p56
      %p58 = scmp.ne.s32.totalorder %s50, %s52
      %p59 = scmp.eq.s32.totalorder %s21, 1
      %p60 = por %p58, %p59
      %p61 = scmp.ne.s32.totalorder %s52, %s53
      %p62 = scmp.eq.s32.totalorder %s21, 0
      %p63 = por %p61, %p62
      %p64 = scmp.ne.s32.totalorder %s52, %s53
      %p65 = scmp.eq.s32.totalorder %s22, 1
      %p66 = por %p64, %p65
      %p68 = scmp.ne.s32.totalorder %s53, %s67
      %p69 = scmp.eq.s32.totalorder %s22, 0
      %p70 = por %p68, %p69
      %s72 = sadd.s32 %s71, 1
      %p75 = scmp.eq.s32.totalorder %s16, 1
      %p76 = scmp.ne.s32.totalorder %s71, %s73
      %p77 = scmp.eq.s32.totalorder %s16, 0
      %p78 = por %p76, %p77
      %p79 = scmp.ne.s32.totalorder %s71, %s73
      %p80 = scmp.eq.s32.totalorder %s21, 1
      %p81 = por %p79, %p80
      %p82 = scmp.ne.s32.totalorder %s73, %s74
      %p83 = scmp.eq.s32.totalorder %s21, 0
      %p84 = por %p82, %p83
      %p85 = scmp.ne.s32.totalorder %s73, %s74
      %p86 = scmp.eq.s32.totalorder %s22, 1
      %p87 = por %p85, %p86
      %p89 = scmp.ne.s32.totalorder %s74, %s88
      %p90 = scmp.eq.s32.totalorder %s22, 0
      %p91 = por %p89, %p90
      %s92 = ssub.s32 %s16, %s23
      %p93 = scmp.eq.s32.totalorder %s92, 0
      %s95 = sadd.s32 %s94, 1
      %s96 = scalar_select %p93, %s94, %s95
      %p99 = pneg %p93
      %p100 = scmp.eq.s32.totalorder %s16, 1
      %p101 = por %p99, %p100
      %p102 = scmp.ne.s32.totalorder %s94, %s97
      %p103 = scmp.eq.s32.totalorder %s16, 0
      %p104 = por %p102, %p103
      %p105 = scmp.ne.s32.totalorder %s94, %s97
      %p106 = scmp.eq.s32.totalorder %s21, 1
      %p107 = por %p105, %p106
      %p108 = scmp.ne.s32.totalorder %s97, %s98
      %p109 = scmp.eq.s32.totalorder %s21, 0
      %p110 = por %p108, %p109
      %p111 = scmp.ne.s32.totalorder %s97, %s98
      %p112 = scmp.eq.s32.totalorder %s22, 1
      %p113 = por %p111, %p112
      %p115 = scmp.ne.s32.totalorder %s98, %s114
      %p116 = scmp.eq.s32.totalorder %s22, 0
      %p117 = por %p115, %p116
      %p118 = scmp.le.s32.totalorder 1, %s16
      %p119 = scmp.lt.s32.totalorder %s16, 3
      %p120 = pnand %p118, %p119
      %p121 = pneg %p120
      // Predicated region
      $region9: #{tpu_custom_call.1} parent=5 // pred_check
        _
      $region10: #{tpu_custom_call.1} parent=5 // pred_check_branch
        %123 = sbr.rel (%p120) target = $region12
      $region11: #{tpu_custom_call.1} parent=5 // pred_region
        %s124 = ssub.s32 %s16, 1
        // Predicated region
        $region13: #{tpu_custom_call.1} parent=11 // pred_check
          %p125 = pneg %p63
        $region14: #{tpu_custom_call.1} parent=11 // pred_check_branch
          %127 = sbr.rel (%p125) target = $region16
        $region15: #{tpu_custom_call.1} parent=11 // pred_region
          %s129 = ssub.s32 128, 128
          %130 = vsyncadd [#allocation6], %s129
          %s131 = sshll.u32 [#allocation5], 4
          %s132 = int_to_ptr.vmem [resolvable:$true] %s131
          %137 = dma.hbm_to_vmem [thread:$0]  %s1, 128, %s132, [#allocation6], 64, 64, 4
        $region16: #{tpu_custom_call.1} parent=11 // pred_fallthru
          _
        // Predicated region
        $region17: #{tpu_custom_call.1} parent=11 // pred_check
          %p138 = pneg %p84
        $region18: #{tpu_custom_call.1} parent=11 // pred_check_branch
          %140 = sbr.rel (%p138) target = $region20
        $region19: #{tpu_custom_call.1} parent=11 // pred_region
          %s142 = ssub.s32 512, 512
          %143 = vsyncadd [#allocation6], %s142
          %s144 = sshll.u32 [#allocation7], 4
          %s145 = int_to_ptr.vmem [resolvable:$true] %s144
          %150 = dma.hbm_to_vmem [thread:$0]  %s2, 512, %s145, [#allocation6], 64, 64, 4
        $region20: #{tpu_custom_call.1} parent=11 // pred_fallthru
          _
      $region12: #{tpu_custom_call.1} parent=5 // pred_fallthru
        _
      %p151 = scmp.lt.s32.totalorder %s16, 2
      // Predicated region
      $region21: #{tpu_custom_call.1} parent=5 // pred_check
        %p152 = pneg %p151
      $region22: #{tpu_custom_call.1} parent=5 // pred_check_branch
        %154 = sbr.rel (%p152) target = $region24
      $region23: #{tpu_custom_call.1} parent=5 // pred_region
        // Predicated region
        $region25: #{tpu_custom_call.1} parent=23 // pred_check
          %p155 = pneg %p36
        $region26: #{tpu_custom_call.1} parent=23 // pred_check_branch
          %157 = sbr.rel (%p155) target = $region28
        $region27: #{tpu_custom_call.1} parent=23 // pred_region
          %s158 = sand.u32 %s26, 1
          %s159 = scalar_lea.sflag [#allocation3], %s158
          %s160 = sand.u32 %s26, 1
          %s161 = smul.addr %s160, 8
          %s162 = scalar_lea.vmem [#allocation2], %s161
          %s164 = ssub.s32 128, 128
          %165 = vsyncadd %s159, %s164
          %s166 = smul.addr %s16, 2
          %s167 = smul.addr %s166, 64
          %s168 = scalar_lea.hbm %s0, %s167
          %s169 = sshll.u32 %s162, 4
          %s170 = int_to_ptr.vmem [resolvable:$true] %s169
          %175 = dma.hbm_to_vmem [thread:$0]  %s168, 128, %s170, %s159, 64, 64, 4
        $region28: #{tpu_custom_call.1} parent=23 // pred_fallthru
          _
      $region24: #{tpu_custom_call.1} parent=5 // pred_fallthru
        _
      %p176 = scmp.le.s32.totalorder 1, %s16
      %p177 = scmp.lt.s32.totalorder %s16, 3
      %p178 = pnand %p176, %p177
      %p179 = pneg %p178
      // Predicated region
      $region29: #{tpu_custom_call.1} parent=5 // pred_check
        _
      $region30: #{tpu_custom_call.1} parent=5 // pred_check_branch
        %181 = sbr.rel (%p178) target = $region32
      $region31: #{tpu_custom_call.1} parent=5 // pred_region
        %s182 = ssub.s32 %s16, 1
        %s183 = sand.u32 %s29, 1
        %s184 = scalar_lea.sflag [#allocation3], %s183
        %s185 = sand.u32 %s29, 1
        %s186 = smul.addr %s185, 8
        %s187 = scalar_lea.vmem [#allocation2], %s186
        // Predicated region
        $region33: #{tpu_custom_call.1} parent=31 // pred_check
          %p188 = pneg %p42
        $region34: #{tpu_custom_call.1} parent=31 // pred_check_branch
          %190 = sbr.rel (%p188) target = $region36
        $region35: #{tpu_custom_call.1} parent=31 // pred_region
          %191 = dma.done %s184, 128
        $region36: #{tpu_custom_call.1} parent=31 // pred_fallthru
          _
        // Predicated region
        $region37: #{tpu_custom_call.1} parent=31 // pred_check
          %p192 = pneg %p63
        $region38: #{tpu_custom_call.1} parent=31 // pred_check_branch
          %194 = sbr.rel (%p192) target = $region40
        $region39: #{tpu_custom_call.1} parent=31 // pred_region
          %195 = dma.done [#allocation6], 128
        $region40: #{tpu_custom_call.1} parent=31 // pred_fallthru
          _
        // Predicated region
        $region41: #{tpu_custom_call.1} parent=31 // pred_check
          %p196 = pneg %p84
        $region42: #{tpu_custom_call.1} parent=31 // pred_check_branch
          %198 = sbr.rel (%p196) target = $region44
        $region43: #{tpu_custom_call.1} parent=31 // pred_region
          %199 = dma.done [#allocation6], 512
        $region44: #{tpu_custom_call.1} parent=31 // pred_fallthru
          _
        %s200 = sand.u32 %s29, 1
        %s201 = scalar_lea.sflag [#allocation3], %s200
        %s202 = sand.u32 %s29, 1
        %s203 = smul.addr %s202, 8
        %s204 = scalar_lea.vmem [#allocation2], %s203
        %p205 = pneg %p42
        %p206 = pneg %p39
        %p207 = pneg %p63
        %p208 = pneg %p60
        %p209 = pneg %p84
        %p210 = pneg %p81
        %p211 = pneg %p110
        %p212 = pneg %p107
        %s213 = sand.u32 %s97, 1
        %s214 = scalar_lea.sflag [#allocation4], %s213
        %s215 = sand.u32 %s97, 1
        %s216 = smul.addr %s215, 8
        %s217 = scalar_lea.vmem [#allocation8], %s216
        %v219 = vld [vmem:[%s187] sm:$0xf]
        %v220 = vld [vmem:[%s187 + $0x4] sm:$0xf]
        %v221 = vld [vmem:[#allocation5] sm:$0xf]
        %v222 = vld [vmem:[#allocation5 + $0x4] sm:$0xf]
        %v225 = vunpack.c.l.b16 %v221
        %v226 = vunpack.c.l.b16 %v222
        %v227 = vpack.c.b16 %v226, %v225
        %v230 = vunpack.c.l.b16 %v219
        %v231 = vunpack.c.l.b16 %v220
        %v232 = vpack.c.b16 %v231, %v230
        %vm234 = vcmask 130048
        %v236 = vsel %vm234, %v227, 0
        %238 = vmatprep.subr.bf16.mxu0 0
        %239 = vmatpush1.bf16.msra.mxu0 %v232
        %240 = vmatprep.subr.bf16.mxu0 0
        %241 = vmatpush1.bf16.msra.mxu0 0
        %242 = vmatprep.subr.bf16.mxu0 0
        %243 = vmatpush1.bf16.msra.mxu0 0
        %244 = vmatprep.subr.bf16.mxu0 0
        %245 = vmatpush1.bf16.msra.mxu0 0
        %246 = vmatprep.subr.bf16.mxu0 0
        %247 = vmatpush1.bf16.msra.mxu0 0
        %248 = vmatprep.subr.bf16.mxu0 0
        %249 = vmatpush1.bf16.msra.mxu0 0
        %250 = vmatprep.subr.bf16.mxu0 0
        %251 = vmatpush1.bf16.msra.mxu0 0
        %252 = vmatprep.subr.bf16.mxu0 0
        %253 = vmatpush1.bf16.msra.mxu0 0
        %254 = vmatprep.subr.bf16.mxu0 0
        %255 = vmatpush1.bf16.msra.mxu0 0
        %256 = vmatprep.subr.bf16.mxu0 0
        %257 = vmatpush1.bf16.msra.mxu0 0
        %258 = vmatprep.subr.bf16.mxu0 0
        %259 = vmatpush1.bf16.msra.mxu0 0
        %260 = vmatprep.subr.bf16.mxu0 0
        %261 = vmatpush1.bf16.msra.mxu0 0
        %262 = vmatprep.subr.bf16.mxu0 0
        %263 = vmatpush1.bf16.msra.mxu0 0
        %264 = vmatprep.subr.bf16.mxu0 0
        %265 = vmatpush1.bf16.msra.mxu0 0
        %266 = vmatprep.subr.bf16.mxu0 0
        %267 = vmatpush1.bf16.msra.mxu0 0
        %268 = vmatprep.subr.bf16.mxu0 0
        %269 = vmatpush1.bf16.msra.mxu0 0
        %270 = vmatprep.mubr.bf16.mxu0 0
        %271 = vmatmul.mubr.bf16.gmra.mrb[0].mxu0 %v236
        %v272 = vpop.f32.mrb[0].mxu0
        %v273 = vadd.f32 0.0, %v272
        %v274 = vpop.f32.mrb[0].mxu0
        %v275 = vpop.f32.mrb[0].mxu0
        %v276 = vadd.f32 0.0, %v275
        %v277 = vpop.f32.mrb[0].mxu0
        %278 = vdwg.mxu0
        %v279 = vpack.c.bf16 %v276, %v273
        %v280 = vld [vmem:[#allocation7] sm:$0xf]
        %v281 = vld [vmem:[#allocation7 + $0x4] sm:$0xf]
        %v282 = vld [vmem:[#allocation7 + $0x8] sm:$0xf]
        %v283 = vld [vmem:[#allocation7 + $0xc] sm:$0xf]
        %v284 = vld [vmem:[#allocation7 + $0x10] sm:$0xf]
        %v285 = vld [vmem:[#allocation7 + $0x14] sm:$0xf]
        %v286 = vld [vmem:[#allocation7 + $0x18] sm:$0xf]
        %v287 = vld [vmem:[#allocation7 + $0x1c] sm:$0xf]
        %v296 = vunpack.c.l.b16 %v280
        %v297 = vunpack.c.l.b16 %v281
        %v298 = vunpack.c.l.b16 %v282
        %v299 = vunpack.c.l.b16 %v283
        %v300 = vunpack.c.l.b16 %v284
        %v301 = vunpack.c.l.b16 %v285
        %v302 = vunpack.c.l.b16 %v286
        %v303 = vunpack.c.l.b16 %v287
        %v304 = vpack.c.b16 %v297, %v296
        %v305 = vpack.c.b16 %v299, %v298
        %v306 = vpack.c.b16 %v301, %v300
        %v307 = vpack.c.b16 %v303, %v302
        %vm312 = vcmask 523264
        %v314 = vsel %vm312, %v279, 0
        %316 = vmatprep.subr.bf16.mxu0 0
        %317 = vmatpush1.bf16.msra.mxu0 %v304
        %318 = vmatprep.subr.bf16.mxu0 0
        %319 = vmatpush1.bf16.msra.mxu0 %v305
        %320 = vmatprep.subr.bf16.mxu0 0
        %321 = vmatpush1.bf16.msra.mxu0 %v306
        %322 = vmatprep.subr.bf16.mxu0 0
        %323 = vmatpush1.bf16.msra.mxu0 %v307
        %324 = vmatprep.subr.bf16.mxu0 0
        %325 = vmatpush1.bf16.msra.mxu0 0
        %326 = vmatprep.subr.bf16.mxu0 0
        %327 = vmatpush1.bf16.msra.mxu0 0
        %328 = vmatprep.subr.bf16.mxu0 0
        %329 = vmatpush1.bf16.msra.mxu0 0
        %330 = vmatprep.subr.bf16.mxu0 0
        %331 = vmatpush1.bf16.msra.mxu0 0
        %332 = vmatprep.subr.bf16.mxu0 0
        %333 = vmatpush1.bf16.msra.mxu0 0
        %334 = vmatprep.subr.bf16.mxu0 0
        %335 = vmatpush1.bf16.msra.mxu0 0
        %336 = vmatprep.subr.bf16.mxu0 0
        %337 = vmatpush1.bf16.msra.mxu0 0
        %338 = vmatprep.subr.bf16.mxu0 0
        %339 = vmatpush1.bf16.msra.mxu0 0
        %340 = vmatprep.subr.bf16.mxu0 0
        %341 = vmatpush1.bf16.msra.mxu0 0
        %342 = vmatprep.subr.bf16.mxu0 0
        %343 = vmatpush1.bf16.msra.mxu0 0
        %344 = vmatprep.subr.bf16.mxu0 0
        %345 = vmatpush1.bf16.msra.mxu0 0
        %346 = vmatprep.subr.bf16.mxu0 0
        %347 = vmatpush1.bf16.msra.mxu0 0
        %348 = vmatprep.mubr.bf16.mxu0 0
        %349 = vmatmul.mubr.bf16.gmra.mrb[0].mxu0 %v314
        %v350 = vpop.f32.mrb[0].mxu0
        %v351 = vadd.f32 0.0, %v350
        %v352 = vpop.f32.mrb[0].mxu0
        %v353 = vpop.f32.mrb[0].mxu0
        %v354 = vadd.f32 0.0, %v353
        %v355 = vpop.f32.mrb[0].mxu0
        %356 = vdwg.mxu0
        %v357 = vpack.c.bf16 %v354, %v351
        %v359 = vunpack.c.l.b16 %v357
        %v360 = vunpack.c.h.b16 %v357
        %v361 = vpack.c.b16 %v359, %v359
        %v362 = vpack.c.b16 %v360, %v360
        %vm365 = vcmask 519168
        %366 = vst.msk [vmem:[%s217] sm:$0xf] %vm365, %v361
        %367 = vst.msk [vmem:[%s217 + $0x4] sm:$0xf] %vm365, %v362
        %s368 = sand.u32 %s97, 1
        %s369 = scalar_lea.sflag [#allocation4], %s368
        %s370 = sand.u32 %s97, 1
        %s371 = smul.addr %s370, 8
        %s372 = scalar_lea.vmem [#allocation8], %s371
        // Predicated region
        $region45: #{tpu_custom_call.1} parent=31 // pred_check
          %p373 = pneg %p107
        $region46: #{tpu_custom_call.1} parent=31 // pred_check_branch
          %375 = sbr.rel (%p373) target = $region48
        $region47: #{tpu_custom_call.1} parent=31 // pred_region
          %s377 = ssub.s32 128, 128
          %378 = vsyncadd %s369, %s377
          %s379 = smul.addr %s21, 2
          %s380 = smul.addr %s379, 64
          %s381 = scalar_lea.hbm %s3, %s380
          %s382 = sshll.u32 %s372, 4
          %s383 = int_to_ptr.vmem [resolvable:$true] %s382
          %388 = dma.vmem_to_hbm [thread:$0]  %s383, 128, %s381, %s369, 64, 64, 4
        $region48: #{tpu_custom_call.1} parent=31 // pred_fallthru
          _
      $region32: #{tpu_custom_call.1} parent=5 // pred_fallthru
        _
      %p389 = scmp.le.s32.totalorder 2, %s16
      // Predicated region
      $region49: #{tpu_custom_call.1} parent=5 // pred_check
        %p390 = pneg %p389
      $region50: #{tpu_custom_call.1} parent=5 // pred_check_branch
        %392 = sbr.rel (%p390) target = $region52
      $region51: #{tpu_custom_call.1} parent=5 // pred_region
        %s393 = ssub.s32 %s16, 2
        // Predicated region
        $region53: #{tpu_custom_call.1} parent=51 // pred_check
          %p394 = pneg %p113
        $region54: #{tpu_custom_call.1} parent=51 // pred_check_branch
          %396 = sbr.rel (%p394) target = $region56
        $region55: #{tpu_custom_call.1} parent=51 // pred_region
          %s397 = sand.u32 %s98, 1
          %s398 = scalar_lea.sflag [#allocation4], %s397
          %s399 = sand.u32 %s98, 1
          %s400 = smul.addr %s399, 8
          %s401 = scalar_lea.vmem [#allocation8], %s400
          %402 = dma.done %s398, 128
        $region56: #{tpu_custom_call.1} parent=51 // pred_fallthru
          _
      $region52: #{tpu_custom_call.1} parent=5 // pred_fallthru
        _
    $region6: #{tpu_custom_call.1} parent=1 // loop_footer
      %s20 = sadd.s32 1, %s16
    $region7: #{tpu_custom_call.1} parent=1 // loop_footer_branch
      %15 = sbr.rel target = $region3
    $region8: #{tpu_custom_call.1} parent=1 // loop_exit
      _
    %403 = vsyncpa [#allocation3], 1
    %s404 = scalar_lea.sflag [#allocation3], 1
    %405 = vsyncpa %s404, 1
    %406 = vsyncpa [#allocation6], 1
    %407 = vsyncpa [#allocation4], 1
    %s408 = scalar_lea.sflag [#allocation4], 1
    %409 = vsyncpa %s408, 1

</llo_original>
